<compile_context>
chip_gen: v6e
topology: v6e:2x2x1
jax: 0.10.0
libtpu: 0.0.40
codegen_flags: <defaults>
</compile_context>

<pallas_src>
import jax
import jax.numpy as jnp
from jax.experimental import pallas as pl
from jax.experimental.pallas import tpu as pltpu

HIDDEN = 100
HIDDEN_PAD = 128  # sublane-aligned hidden; row 100 carries the folded head bias


def net_kernel(xT_ref, w1T_ref, b1T_ref, whT_ref, out_ref):
    xT = xT_ref[...]           # (2, TB)   batch on lanes
    w1T = w1T_ref[...]         # (128, 2)  hidden on sublanes
    b1T = b1T_ref[...]         # (128, 1)
    # Layer 1 (K=2) on the VPU: two broadcast FMAs (outer products) + bias.
    hT = w1T[:, 0:1] * xT[0:1, :] + w1T[:, 1:2] * xT[1:2, :] + b1T
    hT = jnp.maximum(hT, 0.0)  # (128, TB); row 100 == 1.0 (constant bias unit)
    # Fused mu/var heads: one MXU matmul -> lane-dense (2, TB) packed output.
    out_ref[...] = jnp.dot(
        whT_ref[...], hT, preferred_element_type=jnp.float32
    ).astype(out_ref.dtype)


def _round_up(n, m):
    return (n + m - 1) // m * m


def net_forward(x, packed_params, *, max_batch_tile=256):
    """Forward pass of Net: returns (mu, var), each (B, 1) float32."""
    w1T, b1T, whT = packed_params
    B = x.shape[0]
    # tb: multiple of 128 (batch is on the lane axis), capped at 256 so the
    # (128, tb) f32 hidden tile fits in the vreg file and padding waste is
    # bounded; for B > max_batch_tile this also gives >= 2 grid steps.
    tb = min(max_batch_tile, _round_up(B, 128))
    Bp = _round_up(B, tb)
    xT = x.T                                   # (2, B) — batch onto lanes
    if Bp != B:
        xT = jnp.pad(xT, ((0, 0), (0, Bp - B)))
    H = w1T.shape[0]

    out = pl.pallas_call(
        net_kernel,
        out_shape=jax.ShapeDtypeStruct((2, Bp), jnp.float32),
        grid=(Bp // tb,),
        in_specs=[
            pl.BlockSpec((2, tb), lambda i: (0, i)),  # xT: batch-tiled, lane-dense
            pl.BlockSpec((H, 2), lambda i: (0, 0)),   # weights stay VMEM-resident
            pl.BlockSpec((H, 1), lambda i: (0, 0)),
            pl.BlockSpec((2, H), lambda i: (0, 0)),
        ],
        out_specs=pl.BlockSpec((2, tb), lambda i: (0, i)),  # lane-dense output
        compiler_params=pltpu.CompilerParams(
            dimension_semantics=("parallel",)),
    )(xT, w1T, b1T, whT)

    mu = out[0, :B][:, None]
    var = out[1, :B][:, None]
    return mu, var


def init_params(key):
    """Mirror PyTorch nn.Linear shapes + default U(-1/sqrt(fan_in), ...) init:
       linear1: W (100,2), b (100,);  linear2 / linear2_: W (1,100), b (1,)."""
    k1, k2, k3, k4, k5, k6 = jax.random.split(key, 6)
    lim1 = 1.0 / jnp.sqrt(2.0)
    lim2 = 1.0 / jnp.sqrt(100.0)
    w1 = jax.random.uniform(k1, (HIDDEN, 2), jnp.float32, -lim1, lim1)
    b1 = jax.random.uniform(k2, (HIDDEN,), jnp.float32, -lim1, lim1)
    w2 = jax.random.uniform(k3, (1, HIDDEN), jnp.float32, -lim2, lim2)
    b2 = jax.random.uniform(k4, (1,), jnp.float32, -lim2, lim2)
    w3 = jax.random.uniform(k5, (1, HIDDEN), jnp.float32, -lim2, lim2)
    b3 = jax.random.uniform(k6, (1,), jnp.float32, -lim2, lim2)
    return (w1, b1, w2, b2, w3, b3)


def pack_params(params):
    """Pad hidden 100->128 (hidden on sublanes), fuse the mu/var heads into one
       (2, 128) weight, and fold the head biases into hidden row 100
       (b1T[100]=1, W1 row 100 = 0  =>  relu(...) == 1 there)."""
    w1, b1, w2, b2, w3, b3 = params
    # nn.Linear weight is already (out, in) = (100, 2): exactly the layout we want.
    w1T = jnp.zeros((HIDDEN_PAD, 2), jnp.float32).at[:HIDDEN, :].set(w1)
    b1T = jnp.zeros((HIDDEN_PAD, 1), jnp.float32).at[:HIDDEN, 0].set(b1)
    b1T = b1T.at[HIDDEN, 0].set(1.0)                   # constant-1 bias unit
    whT = jnp.zeros((2, HIDDEN_PAD), jnp.float32)
    whT = whT.at[0, :HIDDEN].set(w2[0]).at[1, :HIDDEN].set(w3[0])
    whT = whT.at[0, HIDDEN].set(b2[0]).at[1, HIDDEN].set(b3[0])
    return (w1T, b1T, whT)


if __name__ == "__main__":
    key = jax.random.PRNGKey(0)
    kx, kp = jax.random.split(key)
    B = 8
    x = jax.random.normal(kx, (B, 2), jnp.float32)
    params = init_params(kp)
    packed = pack_params(params)

    mu, var = net_forward(x, packed)
    jax.block_until_ready((mu, var))

    # Reference check in plain JAX (PyTorch semantics, unpadded weights).
    w1, b1, w2, b2, w3, b3 = params
    h_ref = jnp.maximum(x @ w1.T + b1, 0.0)
    mu_ref = h_ref @ w2.T + b2
    var_ref = h_ref @ w3.T + b3
    assert mu.shape == (B, 1) and var.shape == (B, 1)
    assert jnp.allclose(mu, mu_ref, atol=1e-5), "mu mismatch"
    assert jnp.allclose(var, var_ref, atol=1e-5), "var mismatch"

    # TODO(synk): 'var' head has no positivity transform — intentionally matches the PyTorch Net.
    print("KERNEL_OK")
</pallas_src>

<mosaic_0001>
module attributes {stable_mosaic.version = 11 : i64} {
  func.func @net_kernel(%arg0: i32, %arg1: memref<2x128xf32, #tpu.memory_space<vmem>>, %arg2: memref<128x2xf32, #tpu.memory_space<vmem>>, %arg3: memref<128x1xf32, #tpu.memory_space<vmem>>, %arg4: memref<2x128xf32, #tpu.memory_space<vmem>>, %arg5: memref<2x128xf32, #tpu.memory_space<vmem>>) attributes {dimension_semantics = [#tpu.dimension_semantics<parallel>], iteration_bounds = array<i64: 1>, scalar_prefetch = 0 : i64, scratch_operands = 0 : i64, tpu.core_type = #tpu.core_type<tc>, window_params = [{transform_indices = @transform_0, window_bounds = array<i64: 2, 128>}, {pipeline_mode = #tpu.pipeline_mode<synchronous>, transform_indices = @transform_1, window_bounds = array<i64: 128, 2>}, {pipeline_mode = #tpu.pipeline_mode<synchronous>, transform_indices = @transform_2, window_bounds = array<i64: 128, 1>}, {pipeline_mode = #tpu.pipeline_mode<synchronous>, transform_indices = @transform_3, window_bounds = array<i64: 2, 128>}, {transform_indices = @transform_4, window_bounds = array<i64: 2, 128>}]} {
    %c0 = arith.constant 0 : index
    %c0_0 = arith.constant 0 : index
    %0 = vector.load %arg1[%c0, %c0_0] : memref<2x128xf32, #tpu.memory_space<vmem>>, vector<2x128xf32>
    %c0_1 = arith.constant 0 : index
    %c0_2 = arith.constant 0 : index
    %1 = vector.load %arg2[%c0_1, %c0_2] : memref<128x2xf32, #tpu.memory_space<vmem>>, vector<128x2xf32>
    %c0_3 = arith.constant 0 : index
    %c0_4 = arith.constant 0 : index
    %2 = vector.load %arg3[%c0_3, %c0_4] : memref<128x1xf32, #tpu.memory_space<vmem>>, vector<128x1xf32>
    %3 = vector.extract_strided_slice %1 {offsets = [0, 0], sizes = [128, 1], strides = [1, 1]} : vector<128x2xf32> to vector<128x1xf32>
    %4 = vector.extract_strided_slice %0 {offsets = [0, 0], sizes = [1, 128], strides = [1, 1]} : vector<2x128xf32> to vector<1x128xf32>
    %5 = vector.broadcast %3 : vector<128x1xf32> to vector<128x128xf32>
    %6 = vector.broadcast %4 : vector<1x128xf32> to vector<128x128xf32>
    %7 = arith.mulf %5, %6 : vector<128x128xf32>
    %8 = vector.extract_strided_slice %1 {offsets = [0, 1], sizes = [128, 1], strides = [1, 1]} : vector<128x2xf32> to vector<128x1xf32>
    %9 = vector.extract_strided_slice %0 {offsets = [1, 0], sizes = [1, 128], strides = [1, 1]} : vector<2x128xf32> to vector<1x128xf32>
    %10 = vector.broadcast %8 : vector<128x1xf32> to vector<128x128xf32>
    %11 = vector.broadcast %9 : vector<1x128xf32> to vector<128x128xf32>
    %12 = arith.mulf %10, %11 : vector<128x128xf32>
    %13 = arith.addf %7, %12 : vector<128x128xf32>
    %14 = vector.broadcast %2 : vector<128x1xf32> to vector<128x128xf32>
    %15 = arith.addf %13, %14 : vector<128x128xf32>
    %cst = arith.constant 0.000000e+00 : f32
    %16 = vector.broadcast %cst : f32 to vector<128x128xf32>
    %17 = arith.maximumf %15, %16 : vector<128x128xf32>
    %c0_5 = arith.constant 0 : index
    %c0_6 = arith.constant 0 : index
    %18 = vector.load %arg4[%c0_5, %c0_6] : memref<2x128xf32, #tpu.memory_space<vmem>>, vector<2x128xf32>
    %cst_7 = arith.constant dense<0.000000e+00> : vector<2x128xf32>
    %19 = tpu.matmul %18, %17, %cst_7 {dimension_numbers = #tpu.dot_dimension_numbers<[1], [0], [0], [1], [0, 0, 1, 1], [], []>} : vector<2x128xf32>, vector<128x128xf32>, vector<2x128xf32> -> vector<2x128xf32>
    %c0_8 = arith.constant 0 : index
    %c0_9 = arith.constant 0 : index
    %20 = vector.load %arg5[%c0_8, %c0_9] : memref<2x128xf32, #tpu.memory_space<vmem>>, vector<2x128xf32>
    tpu.vector_store %arg5[%c0_8, %c0_9], %19 {strides = array<i32>} : memref<2x128xf32, #tpu.memory_space<vmem>>, vector<2x128xf32>,
    return
  }
  func.func @transform_0(%arg0: i32) -> (i32, i32) {
    %c0_i32 = arith.constant 0 : i32
    %c0_i32_0 = arith.constant 0 : i32
    return %c0_i32, %arg0 : i32, i32
  }
  func.func @transform_1(%arg0: i32) -> (i32, i32) {
    %c0_i32 = arith.constant 0 : i32
    %c0_i32_0 = arith.constant 0 : i32
    %c0_i32_1 = arith.constant 0 : i32
    return %c0_i32, %c0_i32_0 : i32, i32
  }
  func.func @transform_2(%arg0: i32) -> (i32, i32) {
    %c0_i32 = arith.constant 0 : i32
    %c0_i32_0 = arith.constant 0 : i32
    %c0_i32_1 = arith.constant 0 : i32
    return %c0_i32, %c0_i32_0 : i32, i32
  }
  func.func @transform_3(%arg0: i32) -> (i32, i32) {
    %c0_i32 = arith.constant 0 : i32
    %c0_i32_0 = arith.constant 0 : i32
    %c0_i32_1 = arith.constant 0 : i32
    return %c0_i32, %c0_i32_0 : i32, i32
  }
  func.func @transform_4(%arg0: i32) -> (i32, i32) {
    %c0_i32 = arith.constant 0 : i32
    %c0_i32_0 = arith.constant 0 : i32
    return %c0_i32, %arg0 : i32, i32
  }
}

</mosaic_0001>

<llo_original>
// kernel: tpu_custom_call.1
$region0: #{tpu_custom_call.1}
  #allocation0 [shape = 'u32[]', space=smem, size = 0x4, offset = 0x4, fixed_abs, tag = 'smem constant byte address 0x4 - core index']
  #allocation1 [shape = 'u32[144,128]{1,0:T(1,128)}', space=vmem, size = 0x12000, scoped, tag = 'internal scratch']
  %s0 = inlined_call_operand.vmem [shape: f32[2,128], index: 0, kind: input, shape index: {}]
  %s1 = inlined_call_operand.vmem [shape: f32[128,2], index: 1, kind: input, shape index: {}]
  %s2 = inlined_call_operand.vmem [shape: f32[128,1], index: 2, kind: input, shape index: {}]
  %s3 = inlined_call_operand.vmem [shape: f32[2,128], index: 3, kind: input, shape index: {}]
  %s4 = inlined_call_operand.hbm [shape: f32[2,128], index: 4, kind: output, shape index: {}]
  %s5 = sld [smem:[#allocation0]]
  $region26: #{tpu_custom_call.1} parent=0
    _
  %s7 = ssub.s32 1, %s5
  %s8 = scalar_select 0, %s7, %s5
  $region1: #{tpu_custom_call.1} parent=0
    #allocation2 [shape = 'u8[1024]{0}', space=vmem, size = 0x400, scoped, tag = 'output window, operand 0, single buffered']
    #allocation3 [shape = 's32[1]{0}', space=sflag, size = 0x4, scoped, tag = 'scoped memory for tpu_custom_call.1']
    %9 = vsyncpa [#allocation3], 0
    // Predicated region
    $region2: #{tpu_custom_call.1} parent=1 // pred_check
      _
    $region3: #{tpu_custom_call.1} parent=1 // pred_check_branch
      %11 = sbr.rel (0) target = $region5
    $region4: #{tpu_custom_call.1} parent=1 // pred_region
      _
    $region5: #{tpu_custom_call.1} parent=1 // pred_fallthru
      _
    // Predicated region
    $region6: #{tpu_custom_call.1} parent=1 // pred_check
      _
    $region7: #{tpu_custom_call.1} parent=1 // pred_check_branch
      %13 = sbr.rel (0) target = $region9
    $region8: #{tpu_custom_call.1} parent=1 // pred_region
      _
    $region9: #{tpu_custom_call.1} parent=1 // pred_fallthru
      _
    // Predicated region
    $region10: #{tpu_custom_call.1} parent=1 // pred_check
      _
    $region11: #{tpu_custom_call.1} parent=1 // pred_check_branch
      %15 = sbr.rel (0) target = $region13
    $region12: #{tpu_custom_call.1} parent=1 // pred_region
      _
    $region13: #{tpu_custom_call.1} parent=1 // pred_fallthru
      _
    // Predicated region
    $region14: #{tpu_custom_call.1} parent=1 // pred_check
      _
    $region15: #{tpu_custom_call.1} parent=1 // pred_check_branch
      %17 = sbr.rel (0) target = $region17
    $region16: #{tpu_custom_call.1} parent=1 // pred_region
      _
    $region17: #{tpu_custom_call.1} parent=1 // pred_fallthru
      _
    %v18 = vld [vmem:[%s0] sm:$0x3]
    %v19 = vld [vmem:[%s1] sm:$0xff]
    %v20 = vld [vmem:[%s1 + $0x8] sm:$0xff]
    %v21 = vld [vmem:[%s1 + $0x10] sm:$0xff]
    %v22 = vld [vmem:[%s1 + $0x18] sm:$0xff]
    %v23 = vld [vmem:[%s1 + $0x20] sm:$0xff]
    %v24 = vld [vmem:[%s1 + $0x28] sm:$0xff]
    %v25 = vld [vmem:[%s1 + $0x30] sm:$0xff]
    %v26 = vld [vmem:[%s1 + $0x38] sm:$0xff]
    %v27 = vld [vmem:[%s1 + $0x40] sm:$0xff]
    %v28 = vld [vmem:[%s1 + $0x48] sm:$0xff]
    %v29 = vld [vmem:[%s1 + $0x50] sm:$0xff]
    %v30 = vld [vmem:[%s1 + $0x58] sm:$0xff]
    %v31 = vld [vmem:[%s1 + $0x60] sm:$0xff]
    %v32 = vld [vmem:[%s1 + $0x68] sm:$0xff]
    %v33 = vld [vmem:[%s1 + $0x70] sm:$0xff]
    %v34 = vld [vmem:[%s1 + $0x78] sm:$0xff]
    %v35 = vld [vmem:[%s2] sm:$0xff]
    %v36 = vld [vmem:[%s2 + $0x8] sm:$0xff]
    %v37 = vld [vmem:[%s2 + $0x10] sm:$0xff]
    %v38 = vld [vmem:[%s2 + $0x18] sm:$0xff]
    %v39 = vld [vmem:[%s2 + $0x20] sm:$0xff]
    %v40 = vld [vmem:[%s2 + $0x28] sm:$0xff]
    %v41 = vld [vmem:[%s2 + $0x30] sm:$0xff]
    %v42 = vld [vmem:[%s2 + $0x38] sm:$0xff]
    %v43 = vld [vmem:[%s2 + $0x40] sm:$0xff]
    %v44 = vld [vmem:[%s2 + $0x48] sm:$0xff]
    %v45 = vld [vmem:[%s2 + $0x50] sm:$0xff]
    %v46 = vld [vmem:[%s2 + $0x58] sm:$0xff]
    %v47 = vld [vmem:[%s2 + $0x60] sm:$0xff]
    %v48 = vld [vmem:[%s2 + $0x68] sm:$0xff]
    %v49 = vld [vmem:[%s2 + $0x70] sm:$0xff]
    %v50 = vld [vmem:[%s2 + $0x78] sm:$0xff]
    %52 = vset.pattern.permute.xlu0 0
    %53 = vperm.xlu0 %52, %v19
    %v54 = vpop.permute.xlu0 %53
    %57 = vset.pattern.permute.xlu0 0
    %58 = vperm.xlu0 %57, %v20
    %v59 = vpop.permute.xlu0 %58
    %62 = vset.pattern.permute.xlu0 0
    %63 = vperm.xlu0 %62, %v21
    %v64 = vpop.permute.xlu0 %63
    %67 = vset.pattern.permute.xlu0 0
    %68 = vperm.xlu0 %67, %v22
    %v69 = vpop.permute.xlu0 %68
    %72 = vset.pattern.permute.xlu0 0
    %73 = vperm.xlu0 %72, %v23
    %v74 = vpop.permute.xlu0 %73
    %77 = vset.pattern.permute.xlu0 0
    %78 = vperm.xlu0 %77, %v24
    %v79 = vpop.permute.xlu0 %78
    %82 = vset.pattern.permute.xlu0 0
    %83 = vperm.xlu0 %82, %v25
    %v84 = vpop.permute.xlu0 %83
    %87 = vset.pattern.permute.xlu0 0
    %88 = vperm.xlu0 %87, %v26
    %v89 = vpop.permute.xlu0 %88
    %92 = vset.pattern.permute.xlu0 0
    %93 = vperm.xlu0 %92, %v27
    %v94 = vpop.permute.xlu0 %93
    %97 = vset.pattern.permute.xlu0 0
    %98 = vperm.xlu0 %97, %v28
    %v99 = vpop.permute.xlu0 %98
    %102 = vset.pattern.permute.xlu0 0
    %103 = vperm.xlu0 %102, %v29
    %v104 = vpop.permute.xlu0 %103
    %107 = vset.pattern.permute.xlu0 0
    %108 = vperm.xlu0 %107, %v30
    %v109 = vpop.permute.xlu0 %108
    %112 = vset.pattern.permute.xlu0 0
    %113 = vperm.xlu0 %112, %v31
    %v114 = vpop.permute.xlu0 %113
    %117 = vset.pattern.permute.xlu0 0
    %118 = vperm.xlu0 %117, %v32
    %v119 = vpop.permute.xlu0 %118
    %122 = vset.pattern.permute.xlu0 0
    %123 = vperm.xlu0 %122, %v33
    %v124 = vpop.permute.xlu0 %123
    %127 = vset.pattern.permute.xlu0 0
    %128 = vperm.xlu0 %127, %v34
    %v129 = vpop.permute.xlu0 %128
    %v131 = vlaneseq
    %v132 = vshrl.u32 %v131, 7
    %v133 = vsub.s32 0, %v132
    %v134 = vrot.slane %v18, %v133
    %v135 = vmul.f32 %v54, %v134
    %v136 = vmul.f32 %v59, %v134
    %v137 = vmul.f32 %v64, %v134
    %v138 = vmul.f32 %v69, %v134
    %v139 = vmul.f32 %v74, %v134
    %v140 = vmul.f32 %v79, %v134
    %v141 = vmul.f32 %v84, %v134
    %v142 = vmul.f32 %v89, %v134
    %v143 = vmul.f32 %v94, %v134
    %v144 = vmul.f32 %v99, %v134
    %v145 = vmul.f32 %v104, %v134
    %v146 = vmul.f32 %v109, %v134
    %v147 = vmul.f32 %v114, %v134
    %v148 = vmul.f32 %v119, %v134
    %v149 = vmul.f32 %v124, %v134
    %v150 = vmul.f32 %v129, %v134
    %151 = vset.pattern.permute.xlu0 1
    %152 = vperm.xlu0 %151, %v19
    %v153 = vpop.permute.xlu0 %152
    %155 = vset.pattern.permute.xlu0 1
    %156 = vperm.xlu0 %155, %v20
    %v157 = vpop.permute.xlu0 %156
    %159 = vset.pattern.permute.xlu0 1
    %160 = vperm.xlu0 %159, %v21
    %v161 = vpop.permute.xlu0 %160
    %163 = vset.pattern.permute.xlu0 1
    %164 = vperm.xlu0 %163, %v22
    %v165 = vpop.permute.xlu0 %164
    %167 = vset.pattern.permute.xlu0 1
    %168 = vperm.xlu0 %167, %v23
    %v169 = vpop.permute.xlu0 %168
    %171 = vset.pattern.permute.xlu0 1
    %172 = vperm.xlu0 %171, %v24
    %v173 = vpop.permute.xlu0 %172
    %175 = vset.pattern.permute.xlu0 1
    %176 = vperm.xlu0 %175, %v25
    %v177 = vpop.permute.xlu0 %176
    %179 = vset.pattern.permute.xlu0 1
    %180 = vperm.xlu0 %179, %v26
    %v181 = vpop.permute.xlu0 %180
    %183 = vset.pattern.permute.xlu0 1
    %184 = vperm.xlu0 %183, %v27
    %v185 = vpop.permute.xlu0 %184
    %187 = vset.pattern.permute.xlu0 1
    %188 = vperm.xlu0 %187, %v28
    %v189 = vpop.permute.xlu0 %188
    %191 = vset.pattern.permute.xlu0 1
    %192 = vperm.xlu0 %191, %v29
    %v193 = vpop.permute.xlu0 %192
    %195 = vset.pattern.permute.xlu0 1
    %196 = vperm.xlu0 %195, %v30
    %v197 = vpop.permute.xlu0 %196
    %199 = vset.pattern.permute.xlu0 1
    %200 = vperm.xlu0 %199, %v31
    %v201 = vpop.permute.xlu0 %200
    %203 = vset.pattern.permute.xlu0 1
    %204 = vperm.xlu0 %203, %v32
    %v205 = vpop.permute.xlu0 %204
    %207 = vset.pattern.permute.xlu0 1
    %208 = vperm.xlu0 %207, %v33
    %v209 = vpop.permute.xlu0 %208
    %211 = vset.pattern.permute.xlu0 1
    %212 = vperm.xlu0 %211, %v34
    %v213 = vpop.permute.xlu0 %212
    %v215 = vlaneseq
    %v216 = vshrl.u32 %v215, 7
    %v217 = vsub.s32 1, %v216
    %v218 = vrot.slane %v18, %v217
    %v219 = vmul.f32 %v153, %v218
    %v220 = vmul.f32 %v157, %v218
    %v221 = vmul.f32 %v161, %v218
    %v222 = vmul.f32 %v165, %v218
    %v223 = vmul.f32 %v169, %v218
    %v224 = vmul.f32 %v173, %v218
    %v225 = vmul.f32 %v177, %v218
    %v226 = vmul.f32 %v181, %v218
    %v227 = vmul.f32 %v185, %v218
    %v228 = vmul.f32 %v189, %v218
    %v229 = vmul.f32 %v193, %v218
    %v230 = vmul.f32 %v197, %v218
    %v231 = vmul.f32 %v201, %v218
    %v232 = vmul.f32 %v205, %v218
    %v233 = vmul.f32 %v209, %v218
    %v234 = vmul.f32 %v213, %v218
    %v235 = vadd.f32 %v135, %v219
    %v236 = vadd.f32 %v136, %v220
    %v237 = vadd.f32 %v137, %v221
    %v238 = vadd.f32 %v138, %v222
    %v239 = vadd.f32 %v139, %v223
    %v240 = vadd.f32 %v140, %v224
    %v241 = vadd.f32 %v141, %v225
    %v242 = vadd.f32 %v142, %v226
    %v243 = vadd.f32 %v143, %v227
    %v244 = vadd.f32 %v144, %v228
    %v245 = vadd.f32 %v145, %v229
    %v246 = vadd.f32 %v146, %v230
    %v247 = vadd.f32 %v147, %v231
    %v248 = vadd.f32 %v148, %v232
    %v249 = vadd.f32 %v149, %v233
    %v250 = vadd.f32 %v150, %v234
    %252 = vset.pattern.permute.xlu0 0
    %253 = vperm.xlu0 %252, %v35
    %v254 = vpop.permute.xlu0 %253
    %257 = vset.pattern.permute.xlu0 0
    %258 = vperm.xlu0 %257, %v36
    %v259 = vpop.permute.xlu0 %258
    %262 = vset.pattern.permute.xlu0 0
    %263 = vperm.xlu0 %262, %v37
    %v264 = vpop.permute.xlu0 %263
    %267 = vset.pattern.permute.xlu0 0
    %268 = vperm.xlu0 %267, %v38
    %v269 = vpop.permute.xlu0 %268
    %272 = vset.pattern.permute.xlu0 0
    %273 = vperm.xlu0 %272, %v39
    %v274 = vpop.permute.xlu0 %273
    %277 = vset.pattern.permute.xlu0 0
    %278 = vperm.xlu0 %277, %v40
    %v279 = vpop.permute.xlu0 %278
    %282 = vset.pattern.permute.xlu0 0
    %283 = vperm.xlu0 %282, %v41
    %v284 = vpop.permute.xlu0 %283
    %287 = vset.pattern.permute.xlu0 0
    %288 = vperm.xlu0 %287, %v42
    %v289 = vpop.permute.xlu0 %288
    %292 = vset.pattern.permute.xlu0 0
    %293 = vperm.xlu0 %292, %v43
    %v294 = vpop.permute.xlu0 %293
    %297 = vset.pattern.permute.xlu0 0
    %298 = vperm.xlu0 %297, %v44
    %v299 = vpop.permute.xlu0 %298
    %302 = vset.pattern.permute.xlu0 0
    %303 = vperm.xlu0 %302, %v45
    %v304 = vpop.permute.xlu0 %303
    %307 = vset.pattern.permute.xlu0 0
    %308 = vperm.xlu0 %307, %v46
    %v309 = vpop.permute.xlu0 %308
    %312 = vset.pattern.permute.xlu0 0
    %313 = vperm.xlu0 %312, %v47
    %v314 = vpop.permute.xlu0 %313
    %317 = vset.pattern.permute.xlu0 0
    %318 = vperm.xlu0 %317, %v48
    %v319 = vpop.permute.xlu0 %318
    %322 = vset.pattern.permute.xlu0 0
    %323 = vperm.xlu0 %322, %v49
    %v324 = vpop.permute.xlu0 %323
    %327 = vset.pattern.permute.xlu0 0
    %328 = vperm.xlu0 %327, %v50
    %v329 = vpop.permute.xlu0 %328
    %v331 = vadd.f32 %v235, %v254
    %v332 = vadd.f32 %v236, %v259
    %v333 = vadd.f32 %v237, %v264
    %v334 = vadd.f32 %v238, %v269
    %v335 = vadd.f32 %v239, %v274
    %v336 = vadd.f32 %v240, %v279
    %v337 = vadd.f32 %v241, %v284
    %v338 = vadd.f32 %v242, %v289
    %v339 = vadd.f32 %v243, %v294
    %v340 = vadd.f32 %v244, %v299
    %v341 = vadd.f32 %v245, %v304
    %v342 = vadd.f32 %v246, %v309
    %v343 = vadd.f32 %v247, %v314
    %v344 = vadd.f32 %v248, %v319
    %v345 = vadd.f32 %v249, %v324
    %v346 = vadd.f32 %v250, %v329
    %v347 = vmax.f32 %v331, 0.0
    %v348 = vmax.f32 %v332, 0.0
    %v349 = vmax.f32 %v333, 0.0
    %v350 = vmax.f32 %v334, 0.0
    %v351 = vmax.f32 %v335, 0.0
    %v352 = vmax.f32 %v336, 0.0
    %v353 = vmax.f32 %v337, 0.0
    %v354 = vmax.f32 %v338, 0.0
    %v355 = vmax.f32 %v339, 0.0
    %v356 = vmax.f32 %v340, 0.0
    %v357 = vmax.f32 %v341, 0.0
    %v358 = vmax.f32 %v342, 0.0
    %v359 = vmax.f32 %v343, 0.0
    %v360 = vmax.f32 %v344, 0.0
    %v361 = vmax.f32 %v345, 0.0
    %v362 = vmax.f32 %v346, 0.0
    %v363 = vld [vmem:[%s3] sm:$0x3]
    %364 = vmatprep.subr.mxu0 0.0
    %365 = vmatpush1.msra.mxu0 %v362
    %366 = vmatprep.subr.mxu0 0.0
    %367 = vmatpush1.msra.mxu0 %v361
    %368 = vmatprep.subr.mxu0 0.0
    %369 = vmatpush1.msra.mxu0 %v360
    %370 = vmatprep.subr.mxu0 0.0
    %371 = vmatpush1.msra.mxu0 %v359
    %372 = vmatprep.subr.mxu0 0.0
    %373 = vmatpush1.msra.mxu0 %v358
    %374 = vmatprep.subr.mxu0 0.0
    %375 = vmatpush1.msra.mxu0 %v357
    %376 = vmatprep.subr.mxu0 0.0
    %377 = vmatpush1.msra.mxu0 %v356
    %378 = vmatprep.subr.mxu0 0.0
    %379 = vmatpush1.msra.mxu0 %v355
    %380 = vmatprep.subr.mxu0 0.0
    %381 = vmatpush1.msra.mxu0 %v354
    %382 = vmatprep.subr.mxu0 0.0
    %383 = vmatpush1.msra.mxu0 %v353
    %384 = vmatprep.subr.mxu0 0.0
    %385 = vmatpush1.msra.mxu0 %v352
    %386 = vmatprep.subr.mxu0 0.0
    %387 = vmatpush1.msra.mxu0 %v351
    %388 = vmatprep.subr.mxu0 0.0
    %389 = vmatpush1.msra.mxu0 %v350
    %390 = vmatprep.subr.mxu0 0.0
    %391 = vmatpush1.msra.mxu0 %v349
    %392 = vmatprep.subr.mxu0 0.0
    %393 = vmatpush1.msra.mxu0 %v348
    %394 = vmatprep.subr.mxu0 0.0
    %395 = vmatpush1.msra.mxu0 %v347
    %396 = vmatprep.subr.mxu0 0.0
    %397 = vmatpush2.msra.mxu0 0.0
    %398 = vmatprep.subr.mxu0 0.0
    %399 = vmatpush2.msra.mxu0 0.0
    %400 = vmatprep.subr.mxu0 0.0
    %401 = vmatpush2.msra.mxu0 0.0
    %402 = vmatprep.subr.mxu0 0.0
    %403 = vmatpush2.msra.mxu0 0.0
    %404 = vmatprep.subr.mxu0 0.0
    %405 = vmatpush2.msra.mxu0 0.0
    %406 = vmatprep.subr.mxu0 0.0
    %407 = vmatpush2.msra.mxu0 0.0
    %408 = vmatprep.subr.mxu0 0.0
    %409 = vmatpush2.msra.mxu0 0.0
    %410 = vmatprep.subr.mxu0 0.0
    %411 = vmatpush2.msra.mxu0 0.0
    %412 = vmatprep.subr.mxu0 0.0
    %413 = vmatpush2.msra.mxu0 0.0
    %414 = vmatprep.subr.mxu0 0.0
    %415 = vmatpush2.msra.mxu0 0.0
    %416 = vmatprep.subr.mxu0 0.0
    %417 = vmatpush2.msra.mxu0 0.0
    %418 = vmatprep.subr.mxu0 0.0
    %419 = vmatpush2.msra.mxu0 0.0
    %420 = vmatprep.subr.mxu0 0.0
    %421 = vmatpush2.msra.mxu0 0.0
    %422 = vmatprep.subr.mxu0 0.0
    %423 = vmatpush2.msra.mxu0 0.0
    %424 = vmatprep.subr.mxu0 0.0
    %425 = vmatpush2.msra.mxu0 0.0
    %426 = vmatprep.subr.mxu0 0.0
    %427 = vmatpush2.msra.mxu0 0.0
    %428 = vmatprep.mubr.f32.mxu0 0.0
    %429 = vmatmul.mubr.f32.gmra.mxu0 %v363
    %v430 = vpop.f32.mrf.mxu0
    %v431 = vadd.f32 0.0, %v430
    %v432 = vpop.f32.mrf.mxu0
    %433 = vdwg.mxu0
    %434 = vst [vmem:[#allocation2] sm:$0x3] %v431
    // Predicated region
    $region18: #{tpu_custom_call.1} parent=1 // pred_check
      _
    $region19: #{tpu_custom_call.1} parent=1 // pred_check_branch
      %436 = sbr.rel (0) target = $region21
    $region20: #{tpu_custom_call.1} parent=1 // pred_region
      %s438 = ssub.s32 32, 32
      %439 = vsyncadd [#allocation3], %s438
      %s441 = sshll.u32 [#allocation2], 4
      %s442 = int_to_ptr.vmem [resolvable:$true] %s441
      %444 = dma.vmem_to_hbm [thread:$0]  %s442, 32, %s4, [#allocation3]
    $region21: #{tpu_custom_call.1} parent=1 // pred_fallthru
      _
    // Predicated region
    $region22: #{tpu_custom_call.1} parent=1 // pred_check
      _
    $region23: #{tpu_custom_call.1} parent=1 // pred_check_branch
      %446 = sbr.rel (0) target = $region25
    $region24: #{tpu_custom_call.1} parent=1 // pred_region
      %447 = dma.done [#allocation3], 32
    $region25: #{tpu_custom_call.1} parent=1 // pred_fallthru
      _
    %448 = vsyncpa [#allocation3], 1

</llo_original>
